<compile_context>
chip_gen: v7x
topology: tpu7x:2x2x1
jax: 0.10.0
libtpu: 0.0.40
codegen_flags: <defaults>
</compile_context>

<pallas_src>
import jax
import jax.numpy as jnp
from jax.experimental import pallas as pl
from jax.experimental.pallas import tpu as pltpu


# ---------------------------------------------------------------------------
# Kernel: one (block_rows, lane) tile per grid step. Compute in f32 (v5e has
# no bf16 EUP), cast back on store.
# ---------------------------------------------------------------------------
def _silu_kernel(x_ref, o_ref):
    x = x_ref[...].astype(jnp.float32)
    sig = 1.0 / (1.0 + jnp.exp(-x))          # exp -> EUP slot, effectively free
    o_ref[...] = (x * sig).astype(o_ref.dtype)


_TARGET_BLOCK_BYTES = 2 * 1024 * 1024   # ~2 MiB / buffer: ~85%+ HBM roofline,
                                        # 4 pipelined bufs fit v5e's 16 MiB scoped VMEM
_MIN_SPLIT_BYTES = 1 << 20              # arrays >= 1 MiB get >= 2 grid steps (v7x dual-TC)


def _pick_block_rows(rows, lane, itemsize, sublane):
    """Byte-budget block sizing; multiple of `sublane` (or == rows if tiny)."""
    if rows <= sublane:
        return rows  # block == full array dim (always legal)
    br = (_TARGET_BLOCK_BYTES // (lane * itemsize)) // sublane * sublane
    br = max(br, sublane)
    if rows * lane * itemsize >= _MIN_SPLIT_BYTES:
        # Cap at ~half the rows so the grid has >= 2 steps and the "parallel"
        # axis can shard across both v7x TensorCores.
        half = pl.cdiv(pl.cdiv(rows, 2), sublane) * sublane
        br = min(br, half)
    br = min(br, pl.cdiv(rows, sublane) * sublane)
    return br


def _silu_2d(x2, block_rows, lane):
    rows = x2.shape[0]
    grid = (pl.cdiv(rows, block_rows),)
    return pl.pallas_call(
        _silu_kernel,
        out_shape=jax.ShapeDtypeStruct(x2.shape, x2.dtype),
        grid_spec=pltpu.PrefetchScalarGridSpec(
            num_scalar_prefetch=0,
            grid=grid,
            in_specs=[pl.BlockSpec((block_rows, lane), lambda i: (i, 0))],
            out_specs=pl.BlockSpec((block_rows, lane), lambda i: (i, 0)),
        ),
        compiler_params=pltpu.CompilerParams(
            dimension_semantics=("parallel",)),   # lets v7x shard across 2 TCs
    )(x2)


# ---------------------------------------------------------------------------
# Pure-JAX reference (matches torch: x * torch.sigmoid(x))
# ---------------------------------------------------------------------------
def silu_reference(x):
    xf = x.astype(jnp.float32)
    return (xf * (1.0 / (1.0 + jnp.exp(-xf)))).astype(x.dtype)


# ---------------------------------------------------------------------------
# Wrapper
# ---------------------------------------------------------------------------
def silu(x, *, max_lane_width=512):
    orig_shape = x.shape
    n = x.size
    if n == 0:                      # empty-input guard
        return x
    itemsize = x.dtype.itemsize
    sublane = max(8, 32 // max(itemsize, 1))   # 8 (f32) / 16 (bf16) / 32 (int8)
    flat = x.reshape(-1)            # contiguous reshape: free, no copy

    # --- aligned fast path: n divisible by a lane width -> zero wrapper copies
    lane = None
    for cand in (max_lane_width, 256, 128):
        if n >= cand and n % cand == 0:
            lane = cand
            break
    if lane is not None:
        rows = n // lane
        block_rows = _pick_block_rows(rows, lane, itemsize, sublane)
        out2 = _silu_2d(flat.reshape(rows, lane), block_rows, lane)
        return out2.reshape(orig_shape)

    # --- ragged path: aligned prefix through the kernel, tiny tail in plain jnp
    # (avoids a full-array jnp.pad of the input)
    lane = max_lane_width
    while lane > 128 and n < lane * sublane:
        lane //= 2
    n_main = (n // lane) * lane
    if n_main == 0:                 # too small for a lane-dense tile: pure jnp
        return silu_reference(x)
    rows = n_main // lane
    block_rows = _pick_block_rows(rows, lane, itemsize, sublane)
    main_out = _silu_2d(flat[:n_main].reshape(rows, lane), block_rows, lane)
    tail_out = silu_reference(flat[n_main:])          # < lane elements
    return jnp.concatenate([main_out.reshape(-1), tail_out]).reshape(orig_shape)


if __name__ == "__main__":
    key = jax.random.PRNGKey(0)
    k1, k2, k3 = jax.random.split(key, 3)

    # Primary small test, shape consistent with a generic activation input.
    x1 = jax.random.normal(k1, (2, 4, 16, 16), dtype=jnp.float32)
    out1 = jax.block_until_ready(silu(x1))
    ref1 = silu_reference(x1)
    if not jnp.allclose(out1, ref1, atol=1e-6, rtol=1e-6):
        raise AssertionError(
            f"SiLU mismatch (aligned case): max abs err = {jnp.max(jnp.abs(out1 - ref1))}")

    # Ragged shape to exercise the prefix-kernel + jnp-tail path.
    x2 = jax.random.normal(k2, (3, 5, 37), dtype=jnp.float32)
    out2 = jax.block_until_ready(silu(x2))
    ref2 = silu_reference(x2)
    if not jnp.allclose(out2, ref2, atol=1e-6, rtol=1e-6):
        raise AssertionError(
            f"SiLU mismatch (ragged case): max abs err = {jnp.max(jnp.abs(out2 - ref2))}")

    # Larger aligned case to exercise the multi-step "parallel" grid.
    x3 = jax.random.normal(k3, (4, 256, 512), dtype=jnp.float32)
    out3 = jax.block_until_ready(silu(x3))
    ref3 = silu_reference(x3)
    if not jnp.allclose(out3, ref3, atol=1e-6, rtol=1e-6):
        raise AssertionError(
            f"SiLU mismatch (multi-block case): max abs err = {jnp.max(jnp.abs(out3 - ref3))}")

    print("KERNEL_OK")
</pallas_src>

<mosaic_0001>
module attributes {stable_mosaic.version = 11 : i64} {
  func.func @_silu_kernel(%arg0: i32, %arg1: memref<4x512xf32, #tpu.memory_space<vmem>>, %arg2: memref<4x512xf32, #tpu.memory_space<vmem>>) attributes {dimension_semantics = [#tpu.dimension_semantics<parallel>], iteration_bounds = array<i64: 1>, scalar_prefetch = 0 : i64, scratch_operands = 0 : i64, tpu.core_type = #tpu.core_type<tc>, window_params = [{transform_indices = @transform_0, window_bounds = array<i64: 4, 512>}, {transform_indices = @transform_1, window_bounds = array<i64: 4, 512>}]} {
    %c0 = arith.constant 0 : index
    %c0_0 = arith.constant 0 : index
    %0 = vector.load %arg1[%c0, %c0_0] : memref<4x512xf32, #tpu.memory_space<vmem>>, vector<4x512xf32>
    %cst = arith.constant 0.000000e+00 : f32
    %1 = vector.broadcast %cst : f32 to vector<4x512xf32>
    %2 = arith.subf %1, %0 : vector<4x512xf32>
    %3 = math.exp %2 : vector<4x512xf32>
    %cst_1 = arith.constant 1.000000e+00 : f32
    %4 = vector.broadcast %cst_1 : f32 to vector<4x512xf32>
    %5 = arith.addf %4, %3 : vector<4x512xf32>
    %cst_2 = arith.constant 1.000000e+00 : f32
    %6 = vector.broadcast %cst_2 : f32 to vector<4x512xf32>
    %7 = arith.divf %6, %5 : vector<4x512xf32>
    %8 = arith.mulf %0, %7 : vector<4x512xf32>
    %c0_3 = arith.constant 0 : index
    %c0_4 = arith.constant 0 : index
    %9 = vector.load %arg2[%c0_3, %c0_4] : memref<4x512xf32, #tpu.memory_space<vmem>>, vector<4x512xf32>
    tpu.vector_store %arg2[%c0_3, %c0_4], %8 {strides = array<i32>} : memref<4x512xf32, #tpu.memory_space<vmem>>, vector<4x512xf32>,
    return
  }
  func.func @transform_0(%arg0: i32) -> (i32, i32) {
    %c0_i32 = arith.constant 0 : i32
    %c0_i32_0 = arith.constant 0 : i32
    return %arg0, %c0_i32 : i32, i32
  }
  func.func @transform_1(%arg0: i32) -> (i32, i32) {
    %c0_i32 = arith.constant 0 : i32
    %c0_i32_0 = arith.constant 0 : i32
    return %arg0, %c0_i32 : i32, i32
  }
}

</mosaic_0001>

<llo_original>
// kernel: tpu_custom_call.1
$region0: #{tpu_custom_call.1}
  #allocation0 [shape = 'u32[]', space=smem, size = 0x4, offset = 0x4, fixed_abs, tag = 'smem constant byte address 0x4 - core index']
  #allocation1 [shape = 'u32[144,128]{1,0:T(1,128)}', space=vmem, size = 0x12000, scoped, tag = 'internal scratch']
  %s0 = inlined_call_operand.hbm [shape: f32[4,512], index: 0, kind: input, shape index: {}]
  %s1 = inlined_call_operand.hbm [shape: f32[4,512], index: 1, kind: output, shape index: {}]
  %s2 = sld [smem:[#allocation0]]
  $region18: #{tpu_custom_call.1} parent=0
    _
  %s4 = ssub.s32 1, %s2
  %s5 = scalar_select 0, %s4, %s2
  $region1: #{tpu_custom_call.1} parent=0
    #allocation2 [shape = 'u8[8192]{0}', space=vmem, size = 0x2000, scoped, tag = 'input window, operand 0, single buffered']
    #allocation3 [shape = 's32[1]{0}', space=sflag, size = 0x4, scoped, tag = 'scoped memory for tpu_custom_call.1']
    #allocation4 [shape = 's32[1]{0}', space=sflag, size = 0x4, scoped, tag = 'scoped memory for tpu_custom_call.1']
    #allocation5 [shape = 'u8[8192]{0}', space=vmem, size = 0x2000, scoped, tag = 'output window, operand 0, single buffered']
    %6 = vsyncpa [#allocation3], 0
    %7 = vsyncpa [#allocation4], 0
    // Predicated region
    $region2: #{tpu_custom_call.1} parent=1 // pred_check
      _
    $region3: #{tpu_custom_call.1} parent=1 // pred_check_branch
      %9 = sbr.rel (0) target = $region5
    $region4: #{tpu_custom_call.1} parent=1 // pred_region
      %s11 = ssub.s32 256, 256
      %12 = vsyncadd [#allocation3], %s11
      %s14 = sshll.u32 [#allocation2], 4
      %s15 = int_to_ptr.vmem [resolvable:$true] %s14
      %17 = dma.hbm_to_vmem [thread:$0]  %s0, 256, %s15, [#allocation3]
    $region5: #{tpu_custom_call.1} parent=1 // pred_fallthru
      _
    // Predicated region
    $region6: #{tpu_custom_call.1} parent=1 // pred_check
      _
    $region7: #{tpu_custom_call.1} parent=1 // pred_check_branch
      %19 = sbr.rel (0) target = $region9
    $region8: #{tpu_custom_call.1} parent=1 // pred_region
      %20 = dma.done [#allocation3], 256
    $region9: #{tpu_custom_call.1} parent=1 // pred_fallthru
      _
    %v21 = vld [vmem:[#allocation2] sm:$0xff]
    %v22 = vld [vmem:[#allocation2 + $0x8] sm:$0xff]
    %v23 = vsub.f32 0.0, %v21
    %v24 = vsub.f32 0.0, %v22
    %v25 = vmul.f32 %v23, 1.442695
    %v26 = vpow.pop %v25
    %v27 = vmul.f32 %v24, 1.442695
    %v28 = vpow.pop %v27
    %v29 = vadd.f32 %v26, 1.0
    %v30 = vadd.f32 %v28, 1.0
    %v31 = vrcp.pop %v29
    %v32 = vmul.f32 1.0, %v31
    %v33 = vrcp.pop %v30
    %v34 = vmul.f32 1.0, %v33
    %v35 = vmul.f32 %v21, %v32
    %v36 = vmul.f32 %v22, %v34
    %37 = vst [vmem:[#allocation5] sm:$0xff] %v35
    %38 = vst [vmem:[#allocation5 + $0x8] sm:$0xff] %v36
    // Predicated region
    $region10: #{tpu_custom_call.1} parent=1 // pred_check
      _
    $region11: #{tpu_custom_call.1} parent=1 // pred_check_branch
      %40 = sbr.rel (0) target = $region13
    $region12: #{tpu_custom_call.1} parent=1 // pred_region
      %s42 = ssub.s32 256, 256
      %43 = vsyncadd [#allocation4], %s42
      %s45 = sshll.u32 [#allocation5], 4
      %s46 = int_to_ptr.vmem [resolvable:$true] %s45
      %48 = dma.vmem_to_hbm [thread:$0]  %s46, 256, %s1, [#allocation4]
    $region13: #{tpu_custom_call.1} parent=1 // pred_fallthru
      _
    // Predicated region
    $region14: #{tpu_custom_call.1} parent=1 // pred_check
      _
    $region15: #{tpu_custom_call.1} parent=1 // pred_check_branch
      %50 = sbr.rel (0) target = $region17
    $region16: #{tpu_custom_call.1} parent=1 // pred_region
      %51 = dma.done [#allocation4], 256
    $region17: #{tpu_custom_call.1} parent=1 // pred_fallthru
      _
    %52 = vsyncpa [#allocation3], 1
    %53 = vsyncpa [#allocation4], 1

</llo_original>
